<compile_context>
chip_gen: v7x
topology: tpu7x:2x2x1
jax: 0.10.0
libtpu: 0.0.40
codegen_flags: <defaults>
</compile_context>

<pallas_src>
import numpy as np
import jax
import jax.numpy as jnp
from jax.experimental import pallas as pl
from jax.experimental.pallas import tpu as pltpu


_MAX_BLOCK_ELEMS = 512 * 1024  # per-input block elems (2 MiB f32) -> ~8 MiB with 2 inputs x 2 bufs


def _plan(n, d, itemsizes, max_block_elems=_MAX_BLOCK_ELEMS):
    """Row packing, lane tiling and grid chunking (all trace-time Python)."""
    # 1) Sublane multiple depends on the narrowest input dtype (packed sublanes).
    row_mult = 8
    for isz in itemsizes:
        if isz == 2:
            row_mult = max(row_mult, 16)
        elif isz == 1:
            row_mult = max(row_mult, 32)
    r = next(c for c in (1, 2, 4, 8, 16, 32) if (n * c) % row_mult == 0)
    rows = n * r

    # 2) Lane tiling in units of 128 lanes; keep each block <= ~2 MiB f32.
    t_units_max = max(1, (max_block_elems // rows) // 128)
    d_row_min = -(-d // r)                 # ceil(d / r)
    u_min = -(-d_row_min // 128)           # 128-lane units needed per row

    if u_min <= t_units_max:
        if u_min >= 8:                     # >= 512 lanes per half: split for dual-TC (v7x)
            nt, t_units = 2, -(-u_min // 2)
        else:                              # tiny input: single tile, single chunk
            nt, t_units = 1, max(1, u_min)
    else:
        nt = -(-u_min // t_units_max)
        if nt % 2 == 1:                    # force even so the 2-chunk split always exists
            nt += 1
        t_units = -(-u_min // nt)

    td = t_units * 128
    d_row = nt * td                        # padded per-row lane extent
    num_chunks = 2 if nt >= 2 else 1
    tiles_per_chunk = nt // num_chunks
    return r, rows, d_row, td, num_chunks, tiles_per_chunk


def bce_dice_kernel(x_ref, tgt_ref, bce_ref, inter_ref, pt_ref):
    # x_ref/tgt_ref: (rows, TD) VMEM tiles.
    # Outputs: (1, rows, 1) VMEM-resident accumulators (one block per chunk).
    k = pl.program_id(1)  # reduction step within this chunk

    @pl.when(k == 0)
    def _init():
        bce_ref[...] = jnp.zeros_like(bce_ref)
        inter_ref[...] = jnp.zeros_like(inter_ref)
        pt_ref[...] = jnp.zeros_like(pt_ref)

    x = x_ref[...].astype(jnp.float32)
    t = tgt_ref[...].astype(jnp.float32)

    # One exp per element feeds both BCE and sigmoid (halves EUP traffic).
    e = jnp.exp(-jnp.abs(x))
    one_plus_e = 1.0 + e

    # Stable BCE-with-logits: max(x,0) - x*t + log1p(exp(-|x|))
    bce_elem = jnp.maximum(x, 0.0) - x * t + jnp.log1p(e)

    # sigmoid(x) = 1/(1+e) for x>=0, e/(1+e) for x<0 (e = exp(-|x|)).
    # EUP approx reciprocal + one Newton step (VPU) instead of a full divide.
    recip = pl.reciprocal(one_plus_e, approx=True)
    recip = recip * (2.0 - one_plus_e * recip)
    p = jnp.where(x >= 0.0, recip, e * recip)

    # Per-row partial sums; the cross-row/scalar fold happens once in the wrapper.
    bce_ref[...] += jnp.sum(bce_elem, axis=1, keepdims=True)[None]
    inter_ref[...] += jnp.sum(p * t, axis=1, keepdims=True)[None]
    pt_ref[...] += jnp.sum(p + t, axis=1, keepdims=True)[None]


def bce_dice_loss(input_nchw, target_nchw):
    n = input_nchw.shape[0]
    d = int(np.prod(input_nchw.shape[1:]))
    itemsizes = (jnp.dtype(input_nchw.dtype).itemsize,
                 jnp.dtype(target_nchw.dtype).itemsize)
    r, rows, d_row, td, num_chunks, tpc = _plan(n, d, itemsizes)
    d_pad = d_row * r

    x = input_nchw.reshape(n, d)
    t = target_nchw.reshape(n, d)
    if d_pad != d:
        # Harmless padding: logits=-30 -> sigmoid/BCE contributions ~1e-13/elem,
        # targets=0 -> zero contribution; BCE divisor below uses the original n*d.
        pad = d_pad - d
        x = jnp.pad(x, ((0, 0), (0, pad)), constant_values=-30.0)
        t = jnp.pad(t, ((0, 0), (0, pad)), constant_values=0)
    x = x.reshape(rows, d_row)
    t = t.reshape(rows, d_row)

    in_spec = pl.BlockSpec((rows, td), lambda c, k: (0, c * tpc + k))
    out_spec = pl.BlockSpec((1, rows, 1), lambda c, k: (c, 0, 0))
    part_shape = jax.ShapeDtypeStruct((num_chunks, rows, 1), jnp.float32)

    bce_rows, inter_rows, pt_rows = pl.pallas_call(
        bce_dice_kernel,
        out_shape=(part_shape, part_shape, part_shape),
        grid=(num_chunks, tpc),
        in_specs=[in_spec, in_spec],
        out_specs=(out_spec, out_spec, out_spec),
        compiler_params=pltpu.CompilerParams(
            dimension_semantics=("parallel", "arbitrary"),
            vmem_limit_bytes=32 * 1024 * 1024,
        ),
    )(x, t)

    # Tiny finalize (a few dozen floats) in plain JAX.
    smooth = 1e-5
    bce = jnp.sum(bce_rows) / (n * d)
    inter_s = jnp.sum(inter_rows, axis=(0, 2)).reshape(n, r).sum(axis=1)
    pt_s = jnp.sum(pt_rows, axis=(0, 2)).reshape(n, r).sum(axis=1)
    dice = (2.0 * inter_s + smooth) / (pt_s + smooth)
    dice_loss = 1.0 - jnp.sum(dice) / jnp.float32(n)
    return 0.5 * bce + dice_loss


def bce_dice_loss_ref(input_nchw, target_nchw):
    # Pure-JAX reference mirroring the PyTorch forward (for validation).
    x = input_nchw.astype(jnp.float32)
    t = target_nchw.astype(jnp.float32)
    bce = jnp.mean(jnp.maximum(x, 0.0) - x * t + jnp.log1p(jnp.exp(-jnp.abs(x))))
    smooth = 1e-5
    n = x.shape[0]
    p = jax.nn.sigmoid(x).reshape(n, -1)
    tt = t.reshape(n, -1)
    inter = jnp.sum(p * tt, axis=1)
    dice = (2.0 * inter + smooth) / (jnp.sum(p, axis=1) + jnp.sum(tt, axis=1) + smooth)
    dice = 1.0 - jnp.sum(dice) / n
    return 0.5 * bce + dice


def _check(logits, target, tol=2e-4):
    loss = jax.block_until_ready(jax.jit(bce_dice_loss)(logits, target))
    ref = jax.block_until_ready(bce_dice_loss_ref(logits, target))
    assert bool(jnp.isfinite(loss)), float(loss)
    assert abs(float(loss) - float(ref)) < tol, (logits.shape, float(loss), float(ref))


if __name__ == "__main__":
    key = jax.random.PRNGKey(0)
    k1, k2, k3, k4, k5, k6 = jax.random.split(key, 6)

    # 1) Primary small shape: N=2, C=4, 16x16 -> rows packed 2->8, single tile.
    N, C, H, W = 2, 4, 16, 16
    logits = jax.random.normal(k1, (N, C, H, W), dtype=jnp.float32)
    target = jax.random.uniform(k2, (N, C, H, W), dtype=jnp.float32)
    _check(logits, target)

    # 2) Multi-tile / dual-chunk path: grid = (2 chunks, 1 tile/chunk), 2 MiB blocks.
    logits2 = jax.random.normal(k3, (4, 16, 128, 128), dtype=jnp.float32)
    target2 = jax.random.uniform(k4, (4, 16, 128, 128), dtype=jnp.float32)
    _check(logits2, target2)

    # 3) Non-multiple-of-128 D exercises the wrapper-side padding path.
    logits3 = jax.random.normal(k5, (2, 3, 17, 17), dtype=jnp.float32)
    target3 = jax.random.uniform(k6, (2, 3, 17, 17), dtype=jnp.float32)
    _check(logits3, target3)

    # 4) bf16 inputs (half the HBM bytes): rows packed to a multiple of 16.
    _check(logits.astype(jnp.bfloat16), target.astype(jnp.bfloat16))

    print("KERNEL_OK")
</pallas_src>

<mosaic_0001>
module attributes {stable_mosaic.version = 11 : i64} {
  func.func @bce_dice_kernel(%arg0: i32, %arg1: i32, %arg2: memref<8x256xf32, #tpu.memory_space<vmem>>, %arg3: memref<8x256xf32, #tpu.memory_space<vmem>>, %arg4: memref<1x8x1xf32, #tpu.memory_space<vmem>>, %arg5: memref<1x8x1xf32, #tpu.memory_space<vmem>>, %arg6: memref<1x8x1xf32, #tpu.memory_space<vmem>>) attributes {dimension_semantics = [#tpu.dimension_semantics<parallel>, #tpu.dimension_semantics<arbitrary>], iteration_bounds = array<i64: 1, 1>, scalar_prefetch = 0 : i64, scratch_operands = 0 : i64, tpu.core_type = #tpu.core_type<tc>, window_params = [{transform_indices = @transform_0, window_bounds = array<i64: 8, 256>}, {transform_indices = @transform_1, window_bounds = array<i64: 8, 256>}, {transform_indices = @transform_2, window_bounds = array<i64: 1, 8, 1>}, {transform_indices = @transform_3, window_bounds = array<i64: 1, 8, 1>}, {transform_indices = @transform_4, window_bounds = array<i64: 1, 8, 1>}]} {
    %c0_i32 = arith.constant 0 : i32
    %0 = arith.cmpi eq, %arg1, %c0_i32 : i32
    %1 = arith.extui %0 : i1 to i32
    %c0_i32_0 = arith.constant 0 : i32
    %2 = arith.cmpi ne, %1, %c0_i32_0 : i32
    scf.if %2 {
      %cst_29 = arith.constant 0.000000e+00 : f32
      %46 = vector.broadcast %cst_29 : f32 to vector<1x8x1xf32>
      %c0_30 = arith.constant 0 : index
      %c0_31 = arith.constant 0 : index
      %c0_32 = arith.constant 0 : index
      %47 = vector.load %arg4[%c0_30, %c0_31, %c0_32] : memref<1x8x1xf32, #tpu.memory_space<vmem>>, vector<1x8x1xf32>
      tpu.vector_store %arg4[%c0_30, %c0_31, %c0_32], %46 {strides = array<i32>} : memref<1x8x1xf32, #tpu.memory_space<vmem>>, vector<1x8x1xf32>,
      %cst_33 = arith.constant 0.000000e+00 : f32
      %48 = vector.broadcast %cst_33 : f32 to vector<1x8x1xf32>
      %c0_34 = arith.constant 0 : index
      %c0_35 = arith.constant 0 : index
      %c0_36 = arith.constant 0 : index
      %49 = vector.load %arg5[%c0_34, %c0_35, %c0_36] : memref<1x8x1xf32, #tpu.memory_space<vmem>>, vector<1x8x1xf32>
      tpu.vector_store %arg5[%c0_34, %c0_35, %c0_36], %48 {strides = array<i32>} : memref<1x8x1xf32, #tpu.memory_space<vmem>>, vector<1x8x1xf32>,
      %cst_37 = arith.constant 0.000000e+00 : f32
      %50 = vector.broadcast %cst_37 : f32 to vector<1x8x1xf32>
      %c0_38 = arith.constant 0 : index
      %c0_39 = arith.constant 0 : index
      %c0_40 = arith.constant 0 : index
      %51 = vector.load %arg6[%c0_38, %c0_39, %c0_40] : memref<1x8x1xf32, #tpu.memory_space<vmem>>, vector<1x8x1xf32>
      tpu.vector_store %arg6[%c0_38, %c0_39, %c0_40], %50 {strides = array<i32>} : memref<1x8x1xf32, #tpu.memory_space<vmem>>, vector<1x8x1xf32>,
    } else {
    }
    %c0 = arith.constant 0 : index
    %c0_1 = arith.constant 0 : index
    %3 = vector.load %arg2[%c0, %c0_1] : memref<8x256xf32, #tpu.memory_space<vmem>>, vector<8x256xf32>
    %c0_2 = arith.constant 0 : index
    %c0_3 = arith.constant 0 : index
    %4 = vector.load %arg3[%c0_2, %c0_3] : memref<8x256xf32, #tpu.memory_space<vmem>>, vector<8x256xf32>
    %5 = math.absf %3 : vector<8x256xf32>
    %cst = arith.constant 0.000000e+00 : f32
    %6 = vector.broadcast %cst : f32 to vector<8x256xf32>
    %7 = arith.subf %6, %5 : vector<8x256xf32>
    %8 = math.exp %7 : vector<8x256xf32>
    %cst_4 = arith.constant 1.000000e+00 : f32
    %9 = vector.broadcast %cst_4 : f32 to vector<8x256xf32>
    %10 = arith.addf %9, %8 : vector<8x256xf32>
    %cst_5 = arith.constant 0.000000e+00 : f32
    %11 = vector.broadcast %cst_5 : f32 to vector<8x256xf32>
    %12 = arith.maximumf %3, %11 : vector<8x256xf32>
    %13 = arith.mulf %3, %4 : vector<8x256xf32>
    %14 = arith.subf %12, %13 : vector<8x256xf32>
    %15 = math.log1p %8 : vector<8x256xf32>
    %16 = arith.addf %14, %15 : vector<8x256xf32>
    %17 = tpu.reciprocal %10 {approx = true} : vector<8x256xf32> -> vector<8x256xf32>
    %18 = arith.mulf %10, %17 : vector<8x256xf32>
    %cst_6 = arith.constant 2.000000e+00 : f32
    %19 = vector.broadcast %cst_6 : f32 to vector<8x256xf32>
    %20 = arith.subf %19, %18 : vector<8x256xf32>
    %21 = arith.mulf %17, %20 : vector<8x256xf32>
    %cst_7 = arith.constant 0.000000e+00 : f32
    %22 = vector.broadcast %cst_7 : f32 to vector<8x256xf32>
    %23 = arith.cmpf oge, %3, %22 : vector<8x256xf32>
    %24 = arith.mulf %8, %21 : vector<8x256xf32>
    %25 = arith.select %23, %21, %24 : vector<8x256xi1>, vector<8x256xf32>
    %c0_8 = arith.constant 0 : index
    %c0_9 = arith.constant 0 : index
    %c0_10 = arith.constant 0 : index
    %26 = vector.load %arg4[%c0_8, %c0_9, %c0_10] : memref<1x8x1xf32, #tpu.memory_space<vmem>>, vector<1x8x1xf32>
    %cst_11 = arith.constant dense<0.000000e+00> : vector<8xf32>
    %27 = vector.multi_reduction <add>, %16, %cst_11 [1] : vector<8x256xf32> to vector<8xf32>
    %28 = vector.shape_cast %27 : vector<8xf32> to vector<8x1xf32>
    %29 = vector.shape_cast %28 : vector<8x1xf32> to vector<1x8x1xf32>
    %30 = arith.addf %26, %29 : vector<1x8x1xf32>
    %c0_12 = arith.constant 0 : index
    %c0_13 = arith.constant 0 : index
    %c0_14 = arith.constant 0 : index
    %31 = vector.load %arg4[%c0_12, %c0_13, %c0_14] : memref<1x8x1xf32, #tpu.memory_space<vmem>>, vector<1x8x1xf32>
    tpu.vector_store %arg4[%c0_12, %c0_13, %c0_14], %30 {strides = array<i32>} : memref<1x8x1xf32, #tpu.memory_space<vmem>>, vector<1x8x1xf32>,
    %c0_15 = arith.constant 0 : index
    %c0_16 = arith.constant 0 : index
    %c0_17 = arith.constant 0 : index
    %32 = vector.load %arg5[%c0_15, %c0_16, %c0_17] : memref<1x8x1xf32, #tpu.memory_space<vmem>>, vector<1x8x1xf32>
    %33 = arith.mulf %25, %4 : vector<8x256xf32>
    %cst_18 = arith.constant dense<0.000000e+00> : vector<8xf32>
    %34 = vector.multi_reduction <add>, %33, %cst_18 [1] : vector<8x256xf32> to vector<8xf32>
    %35 = vector.shape_cast %34 : vector<8xf32> to vector<8x1xf32>
    %36 = vector.shape_cast %35 : vector<8x1xf32> to vector<1x8x1xf32>
    %37 = arith.addf %32, %36 : vector<1x8x1xf32>
    %c0_19 = arith.constant 0 : index
    %c0_20 = arith.constant 0 : index
    %c0_21 = arith.constant 0 : index
    %38 = vector.load %arg5[%c0_19, %c0_20, %c0_21] : memref<1x8x1xf32, #tpu.memory_space<vmem>>, vector<1x8x1xf32>
    tpu.vector_store %arg5[%c0_19, %c0_20, %c0_21], %37 {strides = array<i32>} : memref<1x8x1xf32, #tpu.memory_space<vmem>>, vector<1x8x1xf32>,
    %c0_22 = arith.constant 0 : index
    %c0_23 = arith.constant 0 : index
    %c0_24 = arith.constant 0 : index
    %39 = vector.load %arg6[%c0_22, %c0_23, %c0_24] : memref<1x8x1xf32, #tpu.memory_space<vmem>>, vector<1x8x1xf32>
    %40 = arith.addf %25, %4 : vector<8x256xf32>
    %cst_25 = arith.constant dense<0.000000e+00> : vector<8xf32>
    %41 = vector.multi_reduction <add>, %40, %cst_25 [1] : vector<8x256xf32> to vector<8xf32>
    %42 = vector.shape_cast %41 : vector<8xf32> to vector<8x1xf32>
    %43 = vector.shape_cast %42 : vector<8x1xf32> to vector<1x8x1xf32>
    %44 = arith.addf %39, %43 : vector<1x8x1xf32>
    %c0_26 = arith.constant 0 : index
    %c0_27 = arith.constant 0 : index
    %c0_28 = arith.constant 0 : index
    %45 = vector.load %arg6[%c0_26, %c0_27, %c0_28] : memref<1x8x1xf32, #tpu.memory_space<vmem>>, vector<1x8x1xf32>
    tpu.vector_store %arg6[%c0_26, %c0_27, %c0_28], %44 {strides = array<i32>} : memref<1x8x1xf32, #tpu.memory_space<vmem>>, vector<1x8x1xf32>,
    return
  }
  func.func @transform_0(%arg0: i32, %arg1: i32) -> (i32, i32) {
    %c1_i32 = arith.constant 1 : i32
    %0 = arith.muli %arg0, %c1_i32 : i32
    %1 = arith.addi %0, %arg1 : i32
    %c0_i32 = arith.constant 0 : i32
    %c0_i32_0 = arith.constant 0 : i32
    return %c0_i32, %1 : i32, i32
  }
  func.func @transform_1(%arg0: i32, %arg1: i32) -> (i32, i32) {
    %c1_i32 = arith.constant 1 : i32
    %0 = arith.muli %arg0, %c1_i32 : i32
    %1 = arith.addi %0, %arg1 : i32
    %c0_i32 = arith.constant 0 : i32
    %c0_i32_0 = arith.constant 0 : i32
    return %c0_i32, %1 : i32, i32
  }
  func.func @transform_2(%arg0: i32, %arg1: i32) -> (i32, i32, i32) {
    %c0_i32 = arith.constant 0 : i32
    %c0_i32_0 = arith.constant 0 : i32
    %c0_i32_1 = arith.constant 0 : i32
    return %arg0, %c0_i32, %c0_i32_0 : i32, i32, i32
  }
  func.func @transform_3(%arg0: i32, %arg1: i32) -> (i32, i32, i32) {
    %c0_i32 = arith.constant 0 : i32
    %c0_i32_0 = arith.constant 0 : i32
    %c0_i32_1 = arith.constant 0 : i32
    return %arg0, %c0_i32, %c0_i32_0 : i32, i32, i32
  }
  func.func @transform_4(%arg0: i32, %arg1: i32) -> (i32, i32, i32) {
    %c0_i32 = arith.constant 0 : i32
    %c0_i32_0 = arith.constant 0 : i32
    %c0_i32_1 = arith.constant 0 : i32
    return %arg0, %c0_i32, %c0_i32_0 : i32, i32, i32
  }
}

</mosaic_0001>

<llo_original>
// kernel: bce_dice_loss.1
$region0: #{bce_dice_loss.1}
  #allocation0 [shape = 'u32[]', space=smem, size = 0x4, offset = 0x4, fixed_abs, tag = 'smem constant byte address 0x4 - core index']
  #allocation1 [shape = 'u32[144,128]{1,0:T(1,128)}', space=vmem, size = 0x12000, scoped, tag = 'internal scratch']
  %s0 = inlined_call_operand.vmem [shape: f32[8,256], index: 0, kind: input, shape index: {}]
  %s1 = inlined_call_operand.vmem [shape: f32[8,256], index: 1, kind: input, shape index: {}]
  %s2 = inlined_call_operand.vmem [shape: f32[1,8,1], index: 2, kind: output, shape index: {0}]
  %s3 = inlined_call_operand.vmem [shape: f32[1,8,1], index: 3, kind: output, shape index: {1}]
  %s4 = inlined_call_operand.vmem [shape: f32[1,8,1], index: 4, kind: output, shape index: {2}]
  %5 = xla_tuple %s2, %s3, %s4
  %s6 = sld [smem:[#allocation0]]
  $region38: #{bce_dice_loss.1} parent=0
    _
  %s8 = ssub.s32 1, %s6
  %s9 = scalar_select 0, %s8, %s6
  // Predicated region
  $region2: #{bce_dice_loss.1} parent=0 // pred_check
    _
  $region3: #{bce_dice_loss.1} parent=0 // pred_check_branch
    %11 = sbr.rel (0) target = $region5
  $region4: #{bce_dice_loss.1} parent=0 // pred_region
    %s12 = sadd.s32 0, 0
    %s13 = smul.u32 2, %s12
    %p14 = scmp.lt.s32.totalorder %s13, 1
    %s15 = scalar_select %p14, %s13, 1
    %s16 = smul.addr %s15, 8
    %s17 = scalar_lea.vmem %s0, %s16
    %s18 = sadd.s32 0, 0
    %s19 = smul.u32 2, %s18
  $region5: #{bce_dice_loss.1} parent=0 // pred_fallthru
    _
  // Predicated region
  $region6: #{bce_dice_loss.1} parent=0 // pred_check
    _
  $region7: #{bce_dice_loss.1} parent=0 // pred_check_branch
    %21 = sbr.rel (0) target = $region9
  $region8: #{bce_dice_loss.1} parent=0 // pred_region
    %s22 = sadd.s32 0, 0
    %s23 = smul.u32 2, %s22
    %p24 = scmp.lt.s32.totalorder %s23, 1
    %s25 = scalar_select %p24, %s23, 1
    %s26 = smul.addr %s25, 8
    %s27 = scalar_lea.vmem %s1, %s26
    %s28 = sadd.s32 0, 0
    %s29 = smul.u32 2, %s28
  $region9: #{bce_dice_loss.1} parent=0 // pred_fallthru
    _
  %s30 = sadd.s32 0, 0
  %s31 = smul.u32 2, %s30
  %p32 = scmp.lt.s32.totalorder %s31, 1
  %s33 = scalar_select %p32, %s31, 1
  %s34 = smul.addr %s33, 8
  %s35 = scalar_lea.vmem %s0, %s34
  %s36 = sadd.s32 0, 0
  %s37 = smul.u32 2, %s36
  %p38 = scmp.lt.s32.totalorder %s37, 1
  %s39 = scalar_select %p38, %s37, 1
  %s40 = smul.addr %s39, 8
  %s41 = scalar_lea.vmem %s1, %s40
  %s42 = sadd.s32 0, 0
  %s43 = smul.u32 2, %s42
  %p44 = scmp.lt.s32.totalorder %s43, 1
  %s45 = scalar_select %p44, %s43, 1
  %s46 = smul.addr %s45, 8
  %s47 = scalar_lea.vmem %s0, %s46
  %s48 = sadd.s32 0, 0
  %s49 = smul.u32 2, %s48
  %s50 = sadd.s32 0, 0
  %s51 = smul.u32 2, %s50
  %p52 = scmp.lt.s32.totalorder %s51, 1
  %s53 = scalar_select %p52, %s51, 1
  %s54 = smul.addr %s53, 8
  %s55 = scalar_lea.vmem %s1, %s54
  %s56 = sadd.s32 0, 0
  %s57 = smul.u32 2, %s56
  %p58 = scmp.eq.s32.totalorder 0, 0
  // Predicated region
  $region10: #{bce_dice_loss.1} parent=0 // pred_check
    %p59 = pneg %p58
  $region11: #{bce_dice_loss.1} parent=0 // pred_check_branch
    %61 = sbr.rel (%p59) target = $region13
  $region12: #{bce_dice_loss.1} parent=0 // pred_region
    %vm62 = vcmask 7168
    %63 = vst.msk [vmem:[%s2] sm:$0xff] %vm62, 0.0
    %64 = vst.msk [vmem:[%s3] sm:$0xff] %vm62, 0.0
    %65 = vst.msk [vmem:[%s4] sm:$0xff] %vm62, 0.0
  $region13: #{bce_dice_loss.1} parent=0 // pred_fallthru
    _
  %v66 = vld [vmem:[%s47] sm:$0xff]
  %v67 = vld [vmem:[%s47 + $0x8] sm:$0xff]
  %v68 = vld [vmem:[%s55] sm:$0xff]
  %v69 = vld [vmem:[%s55 + $0x8] sm:$0xff]
  %v70 = vand.u32 2147483647, %v66
  %v71 = vand.u32 2147483647, %v67
  %v72 = vsub.f32 0.0, %v70
  %v73 = vsub.f32 0.0, %v71
  %v74 = vmul.f32 %v72, 1.442695
  %v75 = vpow.pop %v74
  %v76 = vmul.f32 %v73, 1.442695
  %v77 = vpow.pop %v76
  %v78 = vadd.f32 %v75, 1.0
  %v79 = vadd.f32 %v77, 1.0
  %v80 = vmax.f32 %v66, 0.0
  %v81 = vmax.f32 %v67, 0.0
  %v82 = vmul.f32 %v66, %v68
  %v83 = vmul.f32 %v67, %v69
  %v84 = vsub.f32 %v80, %v82
  %v85 = vsub.f32 %v81, %v83
  %v86 = vadd.f32 %v75, 1.0
  %v87 = vlog2.pop %v86
  %v88 = vmul.f32 %v87, 0.6931472
  %v89 = vmul.f32 -0.5, %v75
  %v90 = vadd.f32 %v89, 1.0
  %v91 = vmul.f32 %v90, %v75
  %v92 = vand.u32 2147483647, %v75
  %vm93 = vcmp.lt.f32.partialorder %v92, 0.0004427343
  %v94 = vsel %vm93, %v91, %v88
  %v95 = vadd.f32 %v77, 1.0
  %v96 = vlog2.pop %v95
  %v97 = vmul.f32 %v96, 0.6931472
  %v98 = vmul.f32 -0.5, %v77
  %v99 = vadd.f32 %v98, 1.0
  %v100 = vmul.f32 %v99, %v77
  %v101 = vand.u32 2147483647, %v77
  %vm102 = vcmp.lt.f32.partialorder %v101, 0.0004427343
  %v103 = vsel %vm102, %v100, %v97
  %v104 = vadd.f32 %v84, %v94
  %v105 = vadd.f32 %v85, %v103
  %v106 = vrcp.pop %v78
  %v107 = vrcp.pop %v79
  %v108 = vmul.f32 %v78, %v106
  %v109 = vmul.f32 %v79, %v107
  %v110 = vsub.f32 2.0, %v108
  %v111 = vsub.f32 2.0, %v109
  %v112 = vmul.f32 %v106, %v110
  %v113 = vmul.f32 %v107, %v111
  %vm114 = vcmp.ge.f32.partialorder %v66, 0.0
  %vm115 = vcmp.ge.f32.partialorder %v67, 0.0
  %v116 = vmul.f32 %v75, %v112
  %v117 = vmul.f32 %v77, %v113
  %v118 = vsel %vm114, %v112, %v116
  %v119 = vsel %vm115, %v113, %v117
  %v120 = vld [vmem:[%s2] sm:$0xff]
  %v121 = vadd.f32 %v104, %v105
  %122 = vadd.xlane.f32.xlu0 %v121
  %v123 = vpop.xlane.xlu0 %122
  %v124 = vadd.f32 %v120, %v123
  %vm125 = vcmask 7168
  %126 = vst.msk [vmem:[%s2] sm:$0xff] %vm125, %v124
  %v127 = vld [vmem:[%s3] sm:$0xff]
  %v128 = vmul.f32 %v118, %v68
  %v129 = vmul.f32 %v119, %v69
  %v130 = vadd.f32 %v128, %v129
  %131 = vadd.xlane.f32.xlu0 %v130
  %v132 = vpop.xlane.xlu0 %131
  %v133 = vadd.f32 %v127, %v132
  %134 = vst.msk [vmem:[%s3] sm:$0xff] %vm125, %v133
  %v135 = vld [vmem:[%s4] sm:$0xff]
  %v136 = vadd.f32 %v118, %v68
  %v137 = vadd.f32 %v119, %v69
  %v138 = vadd.f32 %v136, %v137
  %139 = vadd.xlane.f32.xlu0 %v138
  %v140 = vpop.xlane.xlu0 %139
  %v141 = vadd.f32 %v135, %v140
  %142 = vst.msk [vmem:[%s4] sm:$0xff] %vm125, %v141
  // Predicated region
  $region14: #{bce_dice_loss.1} parent=0 // pred_check
    _
  $region15: #{bce_dice_loss.1} parent=0 // pred_check_branch
    %144 = sbr.rel (0) target = $region17
  $region16: #{bce_dice_loss.1} parent=0 // pred_region
    _
  $region17: #{bce_dice_loss.1} parent=0 // pred_fallthru
    _
  // Predicated region
  $region18: #{bce_dice_loss.1} parent=0 // pred_check
    _
  $region19: #{bce_dice_loss.1} parent=0 // pred_check_branch
    %146 = sbr.rel (0) target = $region21
  $region20: #{bce_dice_loss.1} parent=0 // pred_region
    _
  $region21: #{bce_dice_loss.1} parent=0 // pred_fallthru
    _
  // Predicated region
  $region22: #{bce_dice_loss.1} parent=0 // pred_check
    _
  $region23: #{bce_dice_loss.1} parent=0 // pred_check_branch
    %148 = sbr.rel (0) target = $region25
  $region24: #{bce_dice_loss.1} parent=0 // pred_region
    _
  $region25: #{bce_dice_loss.1} parent=0 // pred_fallthru
    _
  // Predicated region
  $region26: #{bce_dice_loss.1} parent=0 // pred_check
    _
  $region27: #{bce_dice_loss.1} parent=0 // pred_check_branch
    %150 = sbr.rel (0) target = $region29
  $region28: #{bce_dice_loss.1} parent=0 // pred_region
    _
  $region29: #{bce_dice_loss.1} parent=0 // pred_fallthru
    _
  // Predicated region
  $region30: #{bce_dice_loss.1} parent=0 // pred_check
    _
  $region31: #{bce_dice_loss.1} parent=0 // pred_check_branch
    %152 = sbr.rel (0) target = $region33
  $region32: #{bce_dice_loss.1} parent=0 // pred_region
    _
  $region33: #{bce_dice_loss.1} parent=0 // pred_fallthru
    _
  // Predicated region
  $region34: #{bce_dice_loss.1} parent=0 // pred_check
    _
  $region35: #{bce_dice_loss.1} parent=0 // pred_check_branch
    %154 = sbr.rel (0) target = $region37
  $region36: #{bce_dice_loss.1} parent=0 // pred_region
    _
  $region37: #{bce_dice_loss.1} parent=0 // pred_fallthru
    _

</llo_original>
